<compile_context>
chip_gen: v7x
topology: tpu7x:2x2x1
jax: 0.10.0
libtpu: 0.0.40
codegen_flags: <defaults>
</compile_context>

<pallas_src>
import functools

import jax
import jax.numpy as jnp
from jax.experimental import pallas as pl
from jax.experimental.pallas import tpu as pltpu


# --------------------------------------------------------------------------- #
# Kernel
# --------------------------------------------------------------------------- #
def _double_conv_kernel(x_ref, t1_ref, t2_ref, b_ref, o_ref, *,
                        NB, H, Lin, Lmid, Lout, activation):
    """Fused (conv3x3 reflect -> BN -> act) x 2 for a block of NB images.

    x_ref:  (NB, H, Lin)        lane-packed activations, MXU operand dtype
    t1_ref: (3*Lin,  Lmid)      banded stage-1 weights (BN scale folded in)
    t2_ref: (3*Lmid, Lout)      banded stage-2 weights (BN scale folded in)
    b_ref:  (2, Lmax)           row 0 = stage-1 BN shift, row 1 = stage-2 shift (f32)
    o_ref:  (NB, H, Lout)       lane-dense output slab
    """
    def act(y):
        if activation == "relu":
            return jnp.maximum(y, 0.0)
        if activation == "tanh":
            return jnp.tanh(y)
        if activation == "logsigmoid":
            # stable single-EUP form of log(sigmoid(y))
            return jnp.minimum(y, 0.0) - jnp.log1p(jnp.exp(-jnp.abs(y)))
        raise NotImplementedError(activation)

    def stage(xc, t_ref, shift, L):
        # xc: (NB, H, L) in MXU operand dtype.  Height-direction reflect pad
        # (pad=1) via two shifted row views; the dx taps + width reflect pad are
        # folded into the banded weights, stacked along K as [dy=0, dy=1, dy=2].
        top = jnp.concatenate([xc[:, 1:2], xc[:, :H - 1]], axis=1)       # dy = 0
        bot = jnp.concatenate([xc[:, 1:], xc[:, H - 2:H - 1]], axis=1)   # dy = 2
        x3 = jnp.concatenate([top, xc, bot], axis=2).reshape(NB * H, 3 * L)
        y = jnp.dot(x3, t_ref[...], preferred_element_type=jnp.float32)  # one MXU pass
        return act(y + shift)                                            # f32 epilogue

    cdt = t1_ref.dtype                     # MXU operand dtype (bf16 fast path / f32)
    b = b_ref[...]                         # (2, Lmax) f32

    xc = x_ref[...]                        # (NB, H, Lin), already operand dtype
    h = stage(xc, t1_ref, b[0:1, :Lmid], Lin)        # (NB*H, Lmid) f32

    # nn.Dropout(0.5): identity in eval mode.

    hc = h.astype(cdt).reshape(NB, H, Lmid)          # single cast for stage 2
    y = stage(hc, t2_ref, b[1:2, :Lout], Lmid)       # (NB*H, Lout) f32

    o_ref[...] = y.reshape(NB, H, Lout).astype(o_ref.dtype)   # unmasked, lane-dense


# --------------------------------------------------------------------------- #
# Wrapper / parameter plumbing
# --------------------------------------------------------------------------- #
def _build_row_weights(w_oihw, W, scale):
    """Fold 3x3 taps, width-direction reflect padding (pad=1) and the BN scale
    into a stacked banded matrix T of shape (3*W*Cin, W*Cout) with
      T[dy*W*Cin + u*Cin + ci, w*Cout + co]
        = scale[co] * sum_{dx : reflect(w+dx-1)==u} weight[co, ci, dy, dx].
    """
    Cout, Cin = w_oihw.shape[0], w_oihw.shape[1]
    w = jnp.transpose(w_oihw, (2, 3, 1, 0)).astype(jnp.float32)       # (dy, dx, Cin, Cout)
    src = jnp.arange(W)[:, None] + jnp.arange(3)[None, :] - 1         # (Wout, 3) in [-1, W]
    src = jnp.abs(src)                                                # reflect left edge
    src = jnp.where(src > W - 1, 2 * (W - 1) - src, src)              # reflect right edge
    sel = (src[:, :, None] == jnp.arange(W)[None, None, :]).astype(jnp.float32)  # (Wout, dx, Win)
    t = jnp.einsum("odu,ydic->yuioc", sel, w)                         # (dy, Win, Cin, Wout, Cout)
    t = t * scale[None, None, None, None, :]                          # fold BN scale
    return t.reshape(3 * W * Cin, W * Cout)


def _fold_bn(gamma, beta, running_mean, running_var, eps=1e-5):
    scale = gamma / jnp.sqrt(running_var + eps)
    shift = beta - running_mean * scale
    return scale.astype(jnp.float32), shift.astype(jnp.float32)


def double_conv_apply(params, x_packed, *, W, compute_dtype=jnp.bfloat16,
                      activation="relu", out_dtype=jnp.float32):
    """Lane-packed DoubleConv forward (eval mode).

    x_packed: (N, H, W*Cin) in `compute_dtype` -> (N, H, W*Cout) in `out_dtype`.
    Use this entry point to chain DoubleConv layers without NCHW transposes.
    """
    if activation == "bilin":
        # TODO(synk): DoubleConvBILIN is not defined in the provided source.
        raise NotImplementedError("activation='bilin' (DoubleConvBILIN) not available")

    N, H, Lin = x_packed.shape
    Cin = Lin // W
    Cmid = params["w1"].shape[0]
    Cout = params["w2"].shape[0]
    assert params["w1"].shape[1] == Cin and params["w2"].shape[1] == Cmid
    assert H >= 2 and W >= 2, "reflect padding (pad=1) needs H, W >= 2"
    Lmid, Lout = W * Cmid, W * Cout
    Lmax = max(Lmid, Lout)

    s1, sh1 = _fold_bn(*params["bn1"])
    s2, sh2 = _fold_bn(*params["bn2"])
    t1 = _build_row_weights(params["w1"], W, s1).astype(compute_dtype)   # (3*Lin,  Lmid)
    t2 = _build_row_weights(params["w2"], W, s2).astype(compute_dtype)   # (3*Lmid, Lout)
    b = jnp.zeros((2, Lmax), jnp.float32)
    b = b.at[0, :Lmid].set(jnp.tile(sh1, W))
    b = b.at[1, :Lout].set(jnp.tile(sh2, W))

    # 2-way "parallel" batch grid: keeps both v7x TensorCores busy while the
    # per-step matmul gets M = (N/2)*H rows (single step on 1-TC chips is fine).
    G = 2 if (N >= 2 and N % 2 == 0) else 1
    NB = N // G

    kern = functools.partial(_double_conv_kernel, NB=NB, H=H,
                             Lin=Lin, Lmid=Lmid, Lout=Lout, activation=activation)
    return pl.pallas_call(
        kern,
        out_shape=jax.ShapeDtypeStruct((N, H, Lout), out_dtype),
        grid_spec=pltpu.PrefetchScalarGridSpec(
            num_scalar_prefetch=0,
            grid=(G,),
            in_specs=[
                pl.BlockSpec((NB, H, Lin), lambda g: (g, 0, 0)),
                # Weight / shift blocks have constant block indices -> DMA'd
                # once, reused across grid steps.
                pl.BlockSpec((3 * Lin, Lmid), lambda g: (0, 0)),
                pl.BlockSpec((3 * Lmid, Lout), lambda g: (0, 0)),
                pl.BlockSpec((2, Lmax), lambda g: (0, 0)),
            ],
            out_specs=pl.BlockSpec((NB, H, Lout), lambda g: (g, 0, 0)),
        ),
        compiler_params=pltpu.CompilerParams(dimension_semantics=("parallel",)),
    )(x_packed, t1, t2, b)


def double_conv_forward(params, x_nchw, *, compute_dtype=jnp.bfloat16,
                        activation="relu"):
    """DoubleConv forward (eval mode). x_nchw: (N, Cin, H, W) -> (N, Cout, H, W).

    compute_dtype: MXU operand dtype (bf16 is the fast path on all generations);
    accumulation and the BN/activation epilogue are always f32.
    """
    N, Cin, H, W = x_nchw.shape
    Cout = params["w2"].shape[0]
    # NCHW -> (N, H, W*Cin), cast fused into the transpose (single XLA op).
    x = jnp.transpose(x_nchw, (0, 2, 3, 1)).astype(compute_dtype).reshape(N, H, W * Cin)
    out = double_conv_apply(params, x, W=W, compute_dtype=compute_dtype,
                            activation=activation, out_dtype=jnp.float32)
    out = out.reshape(N, H, W, Cout)                                  # free reshape
    return jnp.transpose(out, (0, 3, 1, 2))                           # NHWC -> NCHW


def init_double_conv_params(key, in_channels, out_channels, mid_channels=None, random_bn=True):
    if not mid_channels:
        mid_channels = out_channels
    k1, k2, k3, k4 = jax.random.split(key, 4)
    # PyTorch weight layout (Cout, Cin, 3, 3), bias=False, Kaiming-like init.
    w1 = jax.random.normal(k1, (mid_channels, in_channels, 3, 3), jnp.float32) \
        * jnp.sqrt(2.0 / (in_channels * 9))
    w2 = jax.random.normal(k2, (out_channels, mid_channels, 3, 3), jnp.float32) \
        * jnp.sqrt(2.0 / (mid_channels * 9))

    def bn_state(k, c):
        if not random_bn:   # fresh nn.BatchNorm2d state
            return (jnp.ones(c), jnp.zeros(c), jnp.zeros(c), jnp.ones(c))
        kg, kb, km, kv = jax.random.split(k, 4)
        return (jax.random.uniform(kg, (c,), jnp.float32, 0.5, 1.5),   # gamma
                jax.random.normal(kb, (c,), jnp.float32) * 0.1,        # beta
                jax.random.normal(km, (c,), jnp.float32) * 0.1,        # running_mean
                jax.random.uniform(kv, (c,), jnp.float32, 0.5, 1.5))   # running_var

    return {"w1": w1, "bn1": bn_state(k3, mid_channels),
            "w2": w2, "bn2": bn_state(k4, out_channels)}


# ------------------------- pure-JAX reference (for validation) -------------- #
def _ref_stage(x_nhwc, w_oihw, bn, activation):
    x_pad = jnp.pad(x_nhwc, ((0, 0), (1, 1), (1, 1), (0, 0)), mode="reflect")
    w_hwio = jnp.transpose(w_oihw, (2, 3, 1, 0))
    y = jax.lax.conv_general_dilated(
        x_pad, w_hwio, (1, 1), "VALID",
        dimension_numbers=("NHWC", "HWIO", "NHWC"),
        precision=jax.lax.Precision.HIGHEST)
    scale, shift = _fold_bn(*bn)
    y = y * scale + shift
    if activation == "relu":
        return jnp.maximum(y, 0.0)
    if activation == "tanh":
        return jnp.tanh(y)
    if activation == "logsigmoid":
        return jax.nn.log_sigmoid(y)
    raise NotImplementedError(activation)


def _ref_forward(params, x_nchw, activation="relu"):
    x = jnp.transpose(x_nchw, (0, 2, 3, 1)).astype(jnp.float32)
    y = _ref_stage(x, params["w1"], params["bn1"], activation)
    y = _ref_stage(y, params["w2"], params["bn2"], activation)
    return jnp.transpose(y, (0, 3, 1, 2))


if __name__ == "__main__":
    key = jax.random.PRNGKey(0)
    kx, kp = jax.random.split(key)

    # Small but batched: N=4 exercises the 2-way parallel grid with 2 images
    # (M = 2*H rows) per block.
    N, Cin, Cout, H, W = 4, 4, 8, 16, 16
    x = jax.random.normal(kx, (N, Cin, H, W), jnp.float32)
    params = init_double_conv_params(kp, Cin, Cout)

    ref = jax.block_until_ready(_ref_forward(params, x))

    # f32 MXU-operand path (strict check).
    out_f32 = jax.block_until_ready(
        double_conv_forward(params, x, compute_dtype=jnp.float32))
    assert out_f32.shape == (N, Cout, H, W), out_f32.shape
    assert jnp.allclose(out_f32, ref, atol=1e-3, rtol=1e-3), \
        float(jnp.max(jnp.abs(out_f32 - ref)))

    # bf16 MXU-operand default path, f32 accumulate + epilogue.
    out_bf16 = jax.block_until_ready(double_conv_forward(params, x))
    assert out_bf16.shape == (N, Cout, H, W), out_bf16.shape
    assert jnp.allclose(out_bf16, ref, atol=5e-2, rtol=5e-2), \
        float(jnp.max(jnp.abs(out_bf16 - ref)))

    print("KERNEL_OK")
</pallas_src>

<mosaic_0001>
module attributes {stable_mosaic.version = 11 : i64} {
  func.func @_double_conv_kernel(%arg0: i32, %arg1: memref<2x16x64xf32, #tpu.memory_space<vmem>>, %arg2: memref<192x128xf32, #tpu.memory_space<vmem>>, %arg3: memref<384x128xf32, #tpu.memory_space<vmem>>, %arg4: memref<2x128xf32, #tpu.memory_space<vmem>>, %arg5: memref<2x16x128xf32, #tpu.memory_space<vmem>>) attributes {dimension_semantics = [#tpu.dimension_semantics<parallel>], iteration_bounds = array<i64: 2>, scalar_prefetch = 0 : i64, scratch_operands = 0 : i64, tpu.core_type = #tpu.core_type<tc>, window_params = [{transform_indices = @transform_0, window_bounds = array<i64: 2, 16, 64>}, {pipeline_mode = #tpu.pipeline_mode<synchronous>, transform_indices = @transform_1, window_bounds = array<i64: 192, 128>}, {pipeline_mode = #tpu.pipeline_mode<synchronous>, transform_indices = @transform_2, window_bounds = array<i64: 384, 128>}, {pipeline_mode = #tpu.pipeline_mode<synchronous>, transform_indices = @transform_3, window_bounds = array<i64: 2, 128>}, {transform_indices = @transform_4, window_bounds = array<i64: 2, 16, 128>}]} {
    %c0 = arith.constant 0 : index
    %c0_0 = arith.constant 0 : index
    %0 = vector.load %arg4[%c0, %c0_0] : memref<2x128xf32, #tpu.memory_space<vmem>>, vector<2x128xf32>
    %c0_1 = arith.constant 0 : index
    %c0_2 = arith.constant 0 : index
    %c0_3 = arith.constant 0 : index
    %1 = vector.load %arg1[%c0_1, %c0_2, %c0_3] : memref<2x16x64xf32, #tpu.memory_space<vmem>>, vector<2x16x64xf32>
    %2 = vector.extract_strided_slice %0 {offsets = [0, 0], sizes = [1, 128], strides = [1, 1]} : vector<2x128xf32> to vector<1x128xf32>
    %3 = vector.extract_strided_slice %1 {offsets = [0, 1, 0], sizes = [2, 1, 64], strides = [1, 1, 1]} : vector<2x16x64xf32> to vector<2x1x64xf32>
    %4 = vector.extract_strided_slice %1 {offsets = [0, 0, 0], sizes = [2, 15, 64], strides = [1, 1, 1]} : vector<2x16x64xf32> to vector<2x15x64xf32>
    %5 = tpu.concatenate %3, %4 in 1 : vector<2x1x64xf32>, vector<2x15x64xf32> -> vector<2x16x64xf32>
    %6 = vector.extract_strided_slice %1 {offsets = [0, 1, 0], sizes = [2, 15, 64], strides = [1, 1, 1]} : vector<2x16x64xf32> to vector<2x15x64xf32>
    %7 = vector.extract_strided_slice %1 {offsets = [0, 14, 0], sizes = [2, 1, 64], strides = [1, 1, 1]} : vector<2x16x64xf32> to vector<2x1x64xf32>
    %8 = tpu.concatenate %6, %7 in 1 : vector<2x15x64xf32>, vector<2x1x64xf32> -> vector<2x16x64xf32>
    %9 = tpu.concatenate %5, %1, %8 in 2 : vector<2x16x64xf32>, vector<2x16x64xf32>, vector<2x16x64xf32> -> vector<2x16x192xf32>
    %10 = vector.shape_cast %9 : vector<2x16x192xf32> to vector<32x192xf32>
    %c0_4 = arith.constant 0 : index
    %c0_5 = arith.constant 0 : index
    %11 = vector.load %arg2[%c0_4, %c0_5] : memref<192x128xf32, #tpu.memory_space<vmem>>, vector<192x128xf32>
    %cst = arith.constant dense<0.000000e+00> : vector<32x128xf32>
    %12 = tpu.matmul %10, %11, %cst {dimension_numbers = #tpu.dot_dimension_numbers<[1], [0], [0], [1], [0, 0, 1, 1], [], []>} : vector<32x192xf32>, vector<192x128xf32>, vector<32x128xf32> -> vector<32x128xf32>
    %13 = vector.broadcast %2 : vector<1x128xf32> to vector<32x128xf32>
    %14 = arith.addf %12, %13 : vector<32x128xf32>
    %cst_6 = arith.constant 0.000000e+00 : f32
    %15 = vector.broadcast %cst_6 : f32 to vector<32x128xf32>
    %16 = arith.maximumf %14, %15 : vector<32x128xf32>
    %17 = vector.shape_cast %16 : vector<32x128xf32> to vector<2x16x128xf32>
    %18 = vector.extract_strided_slice %0 {offsets = [1, 0], sizes = [1, 128], strides = [1, 1]} : vector<2x128xf32> to vector<1x128xf32>
    %19 = vector.extract_strided_slice %17 {offsets = [0, 1, 0], sizes = [2, 1, 128], strides = [1, 1, 1]} : vector<2x16x128xf32> to vector<2x1x128xf32>
    %20 = vector.extract_strided_slice %17 {offsets = [0, 0, 0], sizes = [2, 15, 128], strides = [1, 1, 1]} : vector<2x16x128xf32> to vector<2x15x128xf32>
    %21 = tpu.concatenate %19, %20 in 1 : vector<2x1x128xf32>, vector<2x15x128xf32> -> vector<2x16x128xf32>
    %22 = vector.extract_strided_slice %17 {offsets = [0, 1, 0], sizes = [2, 15, 128], strides = [1, 1, 1]} : vector<2x16x128xf32> to vector<2x15x128xf32>
    %23 = vector.extract_strided_slice %17 {offsets = [0, 14, 0], sizes = [2, 1, 128], strides = [1, 1, 1]} : vector<2x16x128xf32> to vector<2x1x128xf32>
    %24 = tpu.concatenate %22, %23 in 1 : vector<2x15x128xf32>, vector<2x1x128xf32> -> vector<2x16x128xf32>
    %25 = tpu.concatenate %21, %17, %24 in 2 : vector<2x16x128xf32>, vector<2x16x128xf32>, vector<2x16x128xf32> -> vector<2x16x384xf32>
    %26 = vector.shape_cast %25 : vector<2x16x384xf32> to vector<32x384xf32>
    %c0_7 = arith.constant 0 : index
    %c0_8 = arith.constant 0 : index
    %27 = vector.load %arg3[%c0_7, %c0_8] : memref<384x128xf32, #tpu.memory_space<vmem>>, vector<384x128xf32>
    %cst_9 = arith.constant dense<0.000000e+00> : vector<32x128xf32>
    %28 = tpu.matmul %26, %27, %cst_9 {dimension_numbers = #tpu.dot_dimension_numbers<[1], [0], [0], [1], [0, 0, 1, 1], [], []>} : vector<32x384xf32>, vector<384x128xf32>, vector<32x128xf32> -> vector<32x128xf32>
    %29 = vector.broadcast %18 : vector<1x128xf32> to vector<32x128xf32>
    %30 = arith.addf %28, %29 : vector<32x128xf32>
    %cst_10 = arith.constant 0.000000e+00 : f32
    %31 = vector.broadcast %cst_10 : f32 to vector<32x128xf32>
    %32 = arith.maximumf %30, %31 : vector<32x128xf32>
    %33 = vector.shape_cast %32 : vector<32x128xf32> to vector<2x16x128xf32>
    %c0_11 = arith.constant 0 : index
    %c0_12 = arith.constant 0 : index
    %c0_13 = arith.constant 0 : index
    %34 = vector.load %arg5[%c0_11, %c0_12, %c0_13] : memref<2x16x128xf32, #tpu.memory_space<vmem>>, vector<2x16x128xf32>
    tpu.vector_store %arg5[%c0_11, %c0_12, %c0_13], %33 {strides = array<i32>} : memref<2x16x128xf32, #tpu.memory_space<vmem>>, vector<2x16x128xf32>,
    return
  }
  func.func @transform_0(%arg0: i32) -> (i32, i32, i32) {
    %c0_i32 = arith.constant 0 : i32
    %c0_i32_0 = arith.constant 0 : i32
    %c0_i32_1 = arith.constant 0 : i32
    return %arg0, %c0_i32, %c0_i32_0 : i32, i32, i32
  }
  func.func @transform_1(%arg0: i32) -> (i32, i32) {
    %c0_i32 = arith.constant 0 : i32
    %c0_i32_0 = arith.constant 0 : i32
    %c0_i32_1 = arith.constant 0 : i32
    return %c0_i32, %c0_i32_0 : i32, i32
  }
  func.func @transform_2(%arg0: i32) -> (i32, i32) {
    %c0_i32 = arith.constant 0 : i32
    %c0_i32_0 = arith.constant 0 : i32
    %c0_i32_1 = arith.constant 0 : i32
    return %c0_i32, %c0_i32_0 : i32, i32
  }
  func.func @transform_3(%arg0: i32) -> (i32, i32) {
    %c0_i32 = arith.constant 0 : i32
    %c0_i32_0 = arith.constant 0 : i32
    %c0_i32_1 = arith.constant 0 : i32
    return %c0_i32, %c0_i32_0 : i32, i32
  }
  func.func @transform_4(%arg0: i32) -> (i32, i32, i32) {
    %c0_i32 = arith.constant 0 : i32
    %c0_i32_0 = arith.constant 0 : i32
    %c0_i32_1 = arith.constant 0 : i32
    return %arg0, %c0_i32, %c0_i32_0 : i32, i32, i32
  }
}

</mosaic_0001>

<llo_original>
// kernel: tpu_custom_call.1
$region0: #{tpu_custom_call.1}
  #allocation0 [shape = 'u32[]', space=smem, size = 0x4, offset = 0x4, fixed_abs, tag = 'smem constant byte address 0x4 - core index']
  #allocation1 [shape = 'u32[144,128]{1,0:T(1,128)}', space=vmem, size = 0x12000, scoped, tag = 'internal scratch']
  %s0 = inlined_call_operand.hbm [shape: f32[4,16,64], index: 0, kind: input, shape index: {}]
  %s1 = inlined_call_operand.hbm [shape: f32[192,128], index: 1, kind: input, shape index: {}]
  %s2 = inlined_call_operand.hbm [shape: f32[384,128], index: 2, kind: input, shape index: {}]
  %s3 = inlined_call_operand.vmem [shape: f32[2,128], index: 3, kind: input, shape index: {}]
  %s4 = inlined_call_operand.hbm [shape: f32[4,16,128], index: 4, kind: output, shape index: {}]
  %s5 = sld [smem:[#allocation0]]
  $region61: #{tpu_custom_call.1} parent=0
    _
  %s7 = ssub.s32 1, %s5
  %s8 = scalar_select 0, %s7, %s5
  $region1: #{tpu_custom_call.1} parent=0
    #allocation2 [shape = 'u8[32768]{0}', space=vmem, size = 0x8000, scoped, tag = 'input window, operand 0']
    #allocation3 [shape = 's32[2]{0}', space=sflag, size = 0x8, scoped, tag = 'scoped memory for tpu_custom_call.1']
    #allocation4 [shape = 's32[2]{0}', space=sflag, size = 0x8, scoped, tag = 'scoped memory for tpu_custom_call.1']
    #allocation5 [shape = 'u8[98304]{0}', space=vmem, size = 0x18000, scoped, tag = 'input window, operand 1, single buffered']
    #allocation6 [shape = 's32[1]{0}', space=sflag, size = 0x4, scoped, tag = 'scoped memory for tpu_custom_call.1']
    #allocation7 [shape = 'u8[196608]{0}', space=vmem, size = 0x30000, scoped, tag = 'input window, operand 2, single buffered']
    #allocation8 [shape = 'u8[32768]{0}', space=vmem, size = 0x8000, scoped, tag = 'output window, operand 0']
    %9 = vsyncpa [#allocation3], 0
    %s10 = scalar_lea.sflag [#allocation3], 1
    %11 = vsyncpa %s10, 0
    %12 = vsyncpa [#allocation6], 0
    %13 = vsyncpa [#allocation4], 0
    %s14 = scalar_lea.sflag [#allocation4], 1
    %15 = vsyncpa %s14, 0
    loop: start=0, step=1, limit=4
    $region2: #{tpu_custom_call.1} parent=1 // loop_pre_header
      _
    $region3: #{tpu_custom_call.1} parent=1 // loop_header
      %s17 = sphi 0, %s21
      %p18 = scmp.ge.s32.totalorder %s17, 4
      %s27 = sphi 0, %s29
      %s30 = sphi 0, %s27
      %s31 = sphi 0, %s30
      %s47 = sphi 0, %s31
      %s51 = sphi 0, %s51
      %s53 = sphi 0, %s51
      %s54 = sphi 0, %s53
      %s68 = sphi 0, %s54
      %s72 = sphi 0, %s72
      %s74 = sphi 0, %s72
      %s75 = sphi 0, %s74
      %s89 = sphi 0, %s75
      %s93 = sphi 0, %s93
      %s95 = sphi 0, %s93
      %s96 = sphi 0, %s95
      %s110 = sphi 0, %s96
      %s116 = sphi 0, %s118
      %s119 = sphi 0, %s116
      %s120 = sphi 0, %s119
      %s136 = sphi 0, %s120
    $region4: #{tpu_custom_call.1} parent=1 // loop_header_branch
      %20 = sbr.rel (%p18) target = $region8
    $region5: #{tpu_custom_call.1} parent=1 // loop_body
      %s22 = ssub.s32 %s17, 1
      %s23 = ssub.s32 %s17, 2
      %s24 = sadd.s32 %s17, 1
      %s25 = ssub.s32 %s17, %s24
      %p26 = scmp.eq.s32.totalorder %s25, 0
      %s28 = sadd.s32 %s27, 1
      %s29 = scalar_select %p26, %s27, %s28
      %p32 = pneg %p26
      %p33 = scmp.eq.s32.totalorder %s17, 1
      %p34 = por %p32, %p33
      %p35 = scmp.ne.s32.totalorder %s27, %s30
      %p36 = scmp.eq.s32.totalorder %s17, 0
      %p37 = por %p35, %p36
      %p38 = scmp.ne.s32.totalorder %s27, %s30
      %p39 = scmp.eq.s32.totalorder %s22, 1
      %p40 = por %p38, %p39
      %p41 = scmp.ne.s32.totalorder %s30, %s31
      %p42 = scmp.eq.s32.totalorder %s22, 0
      %p43 = por %p41, %p42
      %p44 = scmp.ne.s32.totalorder %s30, %s31
      %p45 = scmp.eq.s32.totalorder %s23, 1
      %p46 = por %p44, %p45
      %p48 = scmp.ne.s32.totalorder %s31, %s47
      %p49 = scmp.eq.s32.totalorder %s23, 0
      %p50 = por %p48, %p49
      %s52 = sadd.s32 %s51, 1
      %p55 = scmp.eq.s32.totalorder %s17, 1
      %p56 = scmp.ne.s32.totalorder %s51, %s53
      %p57 = scmp.eq.s32.totalorder %s17, 0
      %p58 = por %p56, %p57
      %p59 = scmp.ne.s32.totalorder %s51, %s53
      %p60 = scmp.eq.s32.totalorder %s22, 1
      %p61 = por %p59, %p60
      %p62 = scmp.ne.s32.totalorder %s53, %s54
      %p63 = scmp.eq.s32.totalorder %s22, 0
      %p64 = por %p62, %p63
      %p65 = scmp.ne.s32.totalorder %s53, %s54
      %p66 = scmp.eq.s32.totalorder %s23, 1
      %p67 = por %p65, %p66
      %p69 = scmp.ne.s32.totalorder %s54, %s68
      %p70 = scmp.eq.s32.totalorder %s23, 0
      %p71 = por %p69, %p70
      %s73 = sadd.s32 %s72, 1
      %p76 = scmp.eq.s32.totalorder %s17, 1
      %p77 = scmp.ne.s32.totalorder %s72, %s74
      %p78 = scmp.eq.s32.totalorder %s17, 0
      %p79 = por %p77, %p78
      %p80 = scmp.ne.s32.totalorder %s72, %s74
      %p81 = scmp.eq.s32.totalorder %s22, 1
      %p82 = por %p80, %p81
      %p83 = scmp.ne.s32.totalorder %s74, %s75
      %p84 = scmp.eq.s32.totalorder %s22, 0
      %p85 = por %p83, %p84
      %p86 = scmp.ne.s32.totalorder %s74, %s75
      %p87 = scmp.eq.s32.totalorder %s23, 1
      %p88 = por %p86, %p87
      %p90 = scmp.ne.s32.totalorder %s75, %s89
      %p91 = scmp.eq.s32.totalorder %s23, 0
      %p92 = por %p90, %p91
      %s94 = sadd.s32 %s93, 1
      %p97 = scmp.eq.s32.totalorder %s17, 1
      %p98 = scmp.ne.s32.totalorder %s93, %s95
      %p99 = scmp.eq.s32.totalorder %s17, 0
      %p100 = por %p98, %p99
      %p101 = scmp.ne.s32.totalorder %s93, %s95
      %p102 = scmp.eq.s32.totalorder %s22, 1
      %p103 = por %p101, %p102
      %p104 = scmp.ne.s32.totalorder %s95, %s96
      %p105 = scmp.eq.s32.totalorder %s22, 0
      %p106 = por %p104, %p105
      %p107 = scmp.ne.s32.totalorder %s95, %s96
      %p108 = scmp.eq.s32.totalorder %s23, 1
      %p109 = por %p107, %p108
      %p111 = scmp.ne.s32.totalorder %s96, %s110
      %p112 = scmp.eq.s32.totalorder %s23, 0
      %p113 = por %p111, %p112
      %s114 = ssub.s32 %s17, %s24
      %p115 = scmp.eq.s32.totalorder %s114, 0
      %s117 = sadd.s32 %s116, 1
      %s118 = scalar_select %p115, %s116, %s117
      %p121 = pneg %p115
      %p122 = scmp.eq.s32.totalorder %s17, 1
      %p123 = por %p121, %p122
      %p124 = scmp.ne.s32.totalorder %s116, %s119
      %p125 = scmp.eq.s32.totalorder %s17, 0
      %p126 = por %p124, %p125
      %p127 = scmp.ne.s32.totalorder %s116, %s119
      %p128 = scmp.eq.s32.totalorder %s22, 1
      %p129 = por %p127, %p128
      %p130 = scmp.ne.s32.totalorder %s119, %s120
      %p131 = scmp.eq.s32.totalorder %s22, 0
      %p132 = por %p130, %p131
      %p133 = scmp.ne.s32.totalorder %s119, %s120
      %p134 = scmp.eq.s32.totalorder %s23, 1
      %p135 = por %p133, %p134
      %p137 = scmp.ne.s32.totalorder %s120, %s136
      %p138 = scmp.eq.s32.totalorder %s23, 0
      %p139 = por %p137, %p138
      %p140 = scmp.le.s32.totalorder 1, %s17
      %p141 = scmp.lt.s32.totalorder %s17, 3
      %p142 = pnand %p140, %p141
      %p143 = pneg %p142
      // Predicated region
      $region9: #{tpu_custom_call.1} parent=5 // pred_check
        _
      $region10: #{tpu_custom_call.1} parent=5 // pred_check_branch
        %145 = sbr.rel (%p142) target = $region12
      $region11: #{tpu_custom_call.1} parent=5 // pred_region
        %s146 = ssub.s32 %s17, 1
        // Predicated region
        $region13: #{tpu_custom_call.1} parent=11 // pred_check
          %p147 = pneg %p64
        $region14: #{tpu_custom_call.1} parent=11 // pred_check_branch
          %149 = sbr.rel (%p147) target = $region16
        $region15: #{tpu_custom_call.1} parent=11 // pred_region
          %s151 = ssub.s32 3072, 3072
          %152 = vsyncadd [#allocation6], %s151
          %s153 = sshll.u32 [#allocation5], 4
          %s154 = int_to_ptr.vmem [resolvable:$true] %s153
          %159 = dma.hbm_to_vmem [thread:$0]  %s1, 3072, %s154, [#allocation6], 128, 128, 8
        $region16: #{tpu_custom_call.1} parent=11 // pred_fallthru
          _
        // Predicated region
        $region17: #{tpu_custom_call.1} parent=11 // pred_check
          %p160 = pneg %p85
        $region18: #{tpu_custom_call.1} parent=11 // pred_check_branch
          %162 = sbr.rel (%p160) target = $region20
        $region19: #{tpu_custom_call.1} parent=11 // pred_region
          %s164 = ssub.s32 6144, 6144
          %165 = vsyncadd [#allocation6], %s164
          %s166 = sshll.u32 [#allocation7], 4
          %s167 = int_to_ptr.vmem [resolvable:$true] %s166
          %172 = dma.hbm_to_vmem [thread:$0]  %s2, 6144, %s167, [#allocation6], 128, 128, 8
        $region20: #{tpu_custom_call.1} parent=11 // pred_fallthru
          _
        // Predicated region
        $region21: #{tpu_custom_call.1} parent=11 // pred_check
          %p173 = pneg %p106
        $region22: #{tpu_custom_call.1} parent=11 // pred_check_branch
          %175 = sbr.rel (%p173) target = $region24
        $region23: #{tpu_custom_call.1} parent=11 // pred_region
          _
        $region24: #{tpu_custom_call.1} parent=11 // pred_fallthru
          _
      $region12: #{tpu_custom_call.1} parent=5 // pred_fallthru
        _
      %p176 = scmp.lt.s32.totalorder %s17, 2
      // Predicated region
      $region25: #{tpu_custom_call.1} parent=5 // pred_check
        %p177 = pneg %p176
      $region26: #{tpu_custom_call.1} parent=5 // pred_check_branch
        %179 = sbr.rel (%p177) target = $region28
      $region27: #{tpu_custom_call.1} parent=5 // pred_region
        // Predicated region
        $region29: #{tpu_custom_call.1} parent=27 // pred_check
          %p180 = pneg %p37
        $region30: #{tpu_custom_call.1} parent=27 // pred_check_branch
          %182 = sbr.rel (%p180) target = $region32
        $region31: #{tpu_custom_call.1} parent=27 // pred_region
          %s183 = sand.u32 %s27, 1
          %s184 = scalar_lea.sflag [#allocation3], %s183
          %s185 = sand.u32 %s27, 1
          %s186 = smul.addr %s185, 32
          %s187 = scalar_lea.vmem [#allocation2], %s186
          %s188 = smul.u32 2, %s17
          %s190 = ssub.s32 512, 512
          %191 = vsyncadd %s184, %s190
          %s192 = smul.addr %s188, 2
          %s193 = smul.addr %s192, 128
          %s194 = scalar_lea.hbm %s0, %s193
          %s195 = sshll.u32 %s187, 4
          %s196 = int_to_ptr.vmem [resolvable:$true] %s195
          %201 = dma.hbm_to_vmem [thread:$0]  %s194, 512, %s196, %s184, 128, 128, 8
        $region32: #{tpu_custom_call.1} parent=27 // pred_fallthru
          _
      $region28: #{tpu_custom_call.1} parent=5 // pred_fallthru
        _
      %p202 = scmp.le.s32.totalorder 1, %s17
      %p203 = scmp.lt.s32.totalorder %s17, 3
      %p204 = pnand %p202, %p203
      %p205 = pneg %p204
      // Predicated region
      $region33: #{tpu_custom_call.1} parent=5 // pred_check
        _
      $region34: #{tpu_custom_call.1} parent=5 // pred_check_branch
        %207 = sbr.rel (%p204) target = $region36
      $region35: #{tpu_custom_call.1} parent=5 // pred_region
        %s208 = ssub.s32 %s17, 1
        %s209 = sand.u32 %s30, 1
        %s210 = scalar_lea.sflag [#allocation3], %s209
        %s211 = sand.u32 %s30, 1
        %s212 = smul.addr %s211, 32
        %s213 = scalar_lea.vmem [#allocation2], %s212
        // Predicated region
        $region37: #{tpu_custom_call.1} parent=35 // pred_check
          %p214 = pneg %p43
        $region38: #{tpu_custom_call.1} parent=35 // pred_check_branch
          %216 = sbr.rel (%p214) target = $region40
        $region39: #{tpu_custom_call.1} parent=35 // pred_region
          %217 = dma.done %s210, 512
        $region40: #{tpu_custom_call.1} parent=35 // pred_fallthru
          _
        // Predicated region
        $region41: #{tpu_custom_call.1} parent=35 // pred_check
          %p218 = pneg %p64
        $region42: #{tpu_custom_call.1} parent=35 // pred_check_branch
          %220 = sbr.rel (%p218) target = $region44
        $region43: #{tpu_custom_call.1} parent=35 // pred_region
          %221 = dma.done [#allocation6], 3072
        $region44: #{tpu_custom_call.1} parent=35 // pred_fallthru
          _
        // Predicated region
        $region45: #{tpu_custom_call.1} parent=35 // pred_check
          %p222 = pneg %p85
        $region46: #{tpu_custom_call.1} parent=35 // pred_check_branch
          %224 = sbr.rel (%p222) target = $region48
        $region47: #{tpu_custom_call.1} parent=35 // pred_region
          %225 = dma.done [#allocation6], 6144
        $region48: #{tpu_custom_call.1} parent=35 // pred_fallthru
          _
        %s226 = sand.u32 %s30, 1
        %s227 = scalar_lea.sflag [#allocation3], %s226
        %s228 = sand.u32 %s30, 1
        %s229 = smul.addr %s228, 32
        %s230 = scalar_lea.vmem [#allocation2], %s229
        %p231 = pneg %p43
        %p232 = pneg %p40
        %p233 = pneg %p64
        %p234 = pneg %p61
        %p235 = pneg %p85
        %p236 = pneg %p82
        %p237 = pneg %p106
        %p238 = pneg %p103
        %p239 = pneg %p132
        %p240 = pneg %p129
        %s241 = sand.u32 %s119, 1
        %s242 = scalar_lea.sflag [#allocation4], %s241
        %s243 = sand.u32 %s119, 1
        %s244 = smul.addr %s243, 32
        %s245 = scalar_lea.vmem [#allocation8], %s244
        %s246 = smul.u32 2, %s22
        %s247 = smul.u32 2, %s22
        %v248 = vld [vmem:[%s3] sm:$0x3]
        %v249 = vld [vmem:[%s213] sm:$0xff]
        %v250 = vld [vmem:[%s213 + $0x8] sm:$0xff]
        %v251 = vld [vmem:[%s213 + $0x10] sm:$0xff]
        %v252 = vld [vmem:[%s213 + $0x18] sm:$0xff]
        %v255 = vrot.slane %v249, 1
        %v256 = vrot.slane %v251, 1
        %vm261 = vcmask 1040384
        %v262 = vrot.slane %v249, 7
        %v263 = vrot.slane %v250, 7
        %v264 = vsel %vm261, %v262, %v263
        %v265 = vrot.slane %v251, 7
        %v266 = vrot.slane %v252, 7
        %v267 = vsel %vm261, %v265, %v266
        %v272 = vsel %vm261, %v255, %v262
        %v273 = vsel %vm261, %v256, %v265
        %vm274 = vcmask 1046528
        %v275 = vrot.slane %v250, 1
        %v276 = vsel %vm274, %v255, %v275
        %v277 = vrot.slane %v252, 1
        %v278 = vsel %vm274, %v256, %v277
        %v283 = vsel %vm274, %v275, %v263
        %v284 = vsel %vm274, %v277, %v266
        %285 = vrot.lane.b32.xlu0 %v249, 64
        %v286 = vpop.permute.xlu0 %285
        %287 = vrot.lane.b32.xlu0 %v250, 64
        %v288 = vpop.permute.xlu0 %287
        %289 = vrot.lane.b32.xlu0 %v251, 64
        %v290 = vpop.permute.xlu0 %289
        %291 = vrot.lane.b32.xlu0 %v252, 64
        %v292 = vpop.permute.xlu0 %291
        %vm297 = vcmask 523264
        %v298 = vsel %vm297, %v272, %v286
        %v299 = vsel %vm297, %v264, %v288
        %v300 = vsel %vm297, %v273, %v290
        %v301 = vsel %vm297, %v267, %v292
        %v302 = vld [vmem:[#allocation5] sm:$0xff]
        %v303 = vld [vmem:[#allocation5 + $0x8] sm:$0xff]
        %v304 = vld [vmem:[#allocation5 + $0x10] sm:$0xff]
        %v305 = vld [vmem:[#allocation5 + $0x18] sm:$0xff]
        %v306 = vld [vmem:[#allocation5 + $0x20] sm:$0xff]
        %v307 = vld [vmem:[#allocation5 + $0x28] sm:$0xff]
        %v308 = vld [vmem:[#allocation5 + $0x30] sm:$0xff]
        %v309 = vld [vmem:[#allocation5 + $0x38] sm:$0xff]
        %v310 = vld [vmem:[#allocation5 + $0x40] sm:$0xff]
        %v311 = vld [vmem:[#allocation5 + $0x48] sm:$0xff]
        %v312 = vld [vmem:[#allocation5 + $0x50] sm:$0xff]
        %v313 = vld [vmem:[#allocation5 + $0x58] sm:$0xff]
        %v314 = vld [vmem:[#allocation5 + $0x60] sm:$0xff]
        %v315 = vld [vmem:[#allocation5 + $0x68] sm:$0xff]
        %v316 = vld [vmem:[#allocation5 + $0x70] sm:$0xff]
        %v317 = vld [vmem:[#allocation5 + $0x78] sm:$0xff]
        %v318 = vld [vmem:[#allocation5 + $0x80] sm:$0xff]
        %v319 = vld [vmem:[#allocation5 + $0x88] sm:$0xff]
        %v320 = vld [vmem:[#allocation5 + $0x90] sm:$0xff]
        %v321 = vld [vmem:[#allocation5 + $0x98] sm:$0xff]
        %v322 = vld [vmem:[#allocation5 + $0xa0] sm:$0xff]
        %v323 = vld [vmem:[#allocation5 + $0xa8] sm:$0xff]
        %v324 = vld [vmem:[#allocation5 + $0xb0] sm:$0xff]
        %v325 = vld [vmem:[#allocation5 + $0xb8] sm:$0xff]
        %v326 = vlaneseq
        %v327 = vshrl.u32 %v326, 7
        %v328 = vsub.s32 0, %v327
        %v329 = vrot.slane %v248, %v328
        %v330 = vsel %vm297, %v276, 0
        %v333 = vsel %vm297, %v283, 0
        %v335 = vsel %vm297, %v278, 0
        %v338 = vsel %vm297, %v284, 0
        %340 = vmatprep.subr.mxu0 0.0
        %341 = vmatpush1.msra.mxu0 %v302
        %342 = vmatprep.subr.mxu0 0.0
        %343 = vmatpush1.msra.mxu0 %v303
        %344 = vmatprep.subr.mxu0 0.0
        %345 = vmatpush1.msra.mxu0 %v304
        %346 = vmatprep.subr.mxu0 0.0
        %347 = vmatpush1.msra.mxu0 %v305
        %348 = vmatprep.subr.mxu0 0.0
        %349 = vmatpush1.msra.mxu0 %v306
        %350 = vmatprep.subr.mxu0 0.0
        %351 = vmatpush1.msra.mxu0 %v307
        %352 = vmatprep.subr.mxu0 0.0
        %353 = vmatpush1.msra.mxu0 %v308
        %354 = vmatprep.subr.mxu0 0.0
        %355 = vmatpush1.msra.mxu0 %v309
        %356 = vmatprep.subr.mxu0 0.0
        %357 = vmatpush1.msra.mxu0 %v310
        %358 = vmatprep.subr.mxu0 0.0
        %359 = vmatpush1.msra.mxu0 %v311
        %360 = vmatprep.subr.mxu0 0.0
        %361 = vmatpush1.msra.mxu0 %v312
        %362 = vmatprep.subr.mxu0 0.0
        %363 = vmatpush1.msra.mxu0 %v313
        %364 = vmatprep.subr.mxu0 0.0
        %365 = vmatpush1.msra.mxu0 %v314
        %366 = vmatprep.subr.mxu0 0.0
        %367 = vmatpush1.msra.mxu0 %v315
        %368 = vmatprep.subr.mxu0 0.0
        %369 = vmatpush1.msra.mxu0 %v316
        %370 = vmatprep.subr.mxu0 0.0
        %371 = vmatpush1.msra.mxu0 %v317
        %372 = vmatprep.subr.mxu0 0.0
        %373 = vmatpush1.msra.mxu0 %v318
        %374 = vmatprep.subr.mxu0 0.0
        %375 = vmatpush1.msra.mxu0 %v319
        %376 = vmatprep.subr.mxu0 0.0
        %377 = vmatpush1.msra.mxu0 %v320
        %378 = vmatprep.subr.mxu0 0.0
        %379 = vmatpush1.msra.mxu0 %v321
        %380 = vmatprep.subr.mxu0 0.0
        %381 = vmatpush1.msra.mxu0 %v322
        %382 = vmatprep.subr.mxu0 0.0
        %383 = vmatpush1.msra.mxu0 %v323
        %384 = vmatprep.subr.mxu0 0.0
        %385 = vmatpush1.msra.mxu0 %v324
        %386 = vmatprep.subr.mxu0 0.0
        %387 = vmatpush1.msra.mxu0 %v325
        %388 = vmatprep.subr.mxu0 0.0
        %389 = vmatpush1.msra.mxu0 0.0
        %390 = vmatprep.subr.mxu0 0.0
        %391 = vmatpush1.msra.mxu0 0.0
        %392 = vmatprep.subr.mxu0 0.0
        %393 = vmatpush1.msra.mxu0 0.0
        %394 = vmatprep.subr.mxu0 0.0
        %395 = vmatpush1.msra.mxu0 0.0
        %396 = vmatprep.subr.mxu0 0.0
        %397 = vmatpush1.msra.mxu0 0.0
        %398 = vmatprep.subr.mxu0 0.0
        %399 = vmatpush1.msra.mxu0 0.0
        %400 = vmatprep.subr.mxu0 0.0
        %401 = vmatpush1.msra.mxu0 0.0
        %402 = vmatprep.subr.mxu0 0.0
        %403 = vmatpush1.msra.mxu0 0.0
        %404 = vmatprep.mubr.f32.mxu0 %v330
        %405 = vmatmul.mubr.f32.gmra.mrb[0].mxu0 %v298
        %v406 = vpop.f32.mrb[0].mxu0
        %v407 = vadd.f32 %v329, %v406
        %v408 = vpop.f32.mrb[0].mxu0
        %409 = vmatprep.mubr.f32.mxu0 %v333
        %410 = vmatmul.mubr.f32.gmra.mrb[0].mxu0 %v299
        %v411 = vpop.f32.mrb[0].mxu0
        %v412 = vadd.f32 %v329, %v411
        %v413 = vpop.f32.mrb[0].mxu0
        %414 = vmatprep.mubr.f32.mxu0 %v335
        %415 = vmatmul.mubr.f32.gmra.mrb[0].mxu0 %v300
        %v416 = vpop.f32.mrb[0].mxu0
        %v417 = vadd.f32 %v329, %v416
        %v418 = vpop.f32.mrb[0].mxu0
        %419 = vmatprep.mubr.f32.mxu0 %v338
        %420 = vmatmul.mubr.f32.gmra.mrb[0].mxu0 %v301
        %v421 = vpop.f32.mrb[0].mxu0
        %v422 = vadd.f32 %v329, %v421
        %v423 = vpop.f32.mrb[0].mxu0
        %424 = vdwg.mxu0
        %v425 = vmax.f32 %v407, 0.0
        %v426 = vmax.f32 %v412, 0.0
        %v427 = vmax.f32 %v417, 0.0
        %v428 = vmax.f32 %v422, 0.0
        %v431 = vrot.slane %v425, 1
        %v432 = vrot.slane %v427, 1
        %v437 = vrot.slane %v425, 7
        %v438 = vrot.slane %v426, 7
        %v439 = vsel %vm261, %v437, %v438
        %v440 = vrot.slane %v427, 7
        %v441 = vrot.slane %v428, 7
        %v442 = vsel %vm261, %v440, %v441
        %v447 = vsel %vm261, %v431, %v437
        %v448 = vsel %vm261, %v432, %v440
        %v449 = vrot.slane %v426, 1
        %v450 = vsel %vm274, %v431, %v449
        %v451 = vrot.slane %v428, 1
        %v452 = vsel %vm274, %v432, %v451
        %v459 = vsel %vm274, %v449, %v438
        %v460 = vsel %vm274, %v451, %v441
        %v461 = vld [vmem:[#allocation7] sm:$0xff]
        %v462 = vld [vmem:[#allocation7 + $0x8] sm:$0xff]
        %v463 = vld [vmem:[#allocation7 + $0x10] sm:$0xff]
        %v464 = vld [vmem:[#allocation7 + $0x18] sm:$0xff]
        %v465 = vld [vmem:[#allocation7 + $0x20] sm:$0xff]
        %v466 = vld [vmem:[#allocation7 + $0x28] sm:$0xff]
        %v467 = vld [vmem:[#allocation7 + $0x30] sm:$0xff]
        %v468 = vld [vmem:[#allocation7 + $0x38] sm:$0xff]
        %v469 = vld [vmem:[#allocation7 + $0x40] sm:$0xff]
        %v470 = vld [vmem:[#allocation7 + $0x48] sm:$0xff]
        %v471 = vld [vmem:[#allocation7 + $0x50] sm:$0xff]
        %v472 = vld [vmem:[#allocation7 + $0x58] sm:$0xff]
        %v473 = vld [vmem:[#allocation7 + $0x60] sm:$0xff]
        %v474 = vld [vmem:[#allocation7 + $0x68] sm:$0xff]
        %v475 = vld [vmem:[#allocation7 + $0x70] sm:$0xff]
        %v476 = vld [vmem:[#allocation7 + $0x78] sm:$0xff]
        %v477 = vld [vmem:[#allocation7 + $0x80] sm:$0xff]
        %v478 = vld [vmem:[#allocation7 + $0x88] sm:$0xff]
        %v479 = vld [vmem:[#allocation7 + $0x90] sm:$0xff]
        %v480 = vld [vmem:[#allocation7 + $0x98] sm:$0xff]
        %v481 = vld [vmem:[#allocation7 + $0xa0] sm:$0xff]
        %v482 = vld [vmem:[#allocation7 + $0xa8] sm:$0xff]
        %v483 = vld [vmem:[#allocation7 + $0xb0] sm:$0xff]
        %v484 = vld [vmem:[#allocation7 + $0xb8] sm:$0xff]
        %v485 = vld [vmem:[#allocation7 + $0xc0] sm:$0xff]
        %v486 = vld [vmem:[#allocation7 + $0xc8] sm:$0xff]
        %v487 = vld [vmem:[#allocation7 + $0xd0] sm:$0xff]
        %v488 = vld [vmem:[#allocation7 + $0xd8] sm:$0xff]
        %v489 = vld [vmem:[#allocation7 + $0xe0] sm:$0xff]
        %v490 = vld [vmem:[#allocation7 + $0xe8] sm:$0xff]
        %v491 = vld [vmem:[#allocation7 + $0xf0] sm:$0xff]
        %v492 = vld [vmem:[#allocation7 + $0xf8] sm:$0xff]
        %v493 = vld [vmem:[#allocation7 + $0x100] sm:$0xff]
        %v494 = vld [vmem:[#allocation7 + $0x108] sm:$0xff]
        %v495 = vld [vmem:[#allocation7 + $0x110] sm:$0xff]
        %v496 = vld [vmem:[#allocation7 + $0x118] sm:$0xff]
        %v497 = vld [vmem:[#allocation7 + $0x120] sm:$0xff]
        %v498 = vld [vmem:[#allocation7 + $0x128] sm:$0xff]
        %v499 = vld [vmem:[#allocation7 + $0x130] sm:$0xff]
        %v500 = vld [vmem:[#allocation7 + $0x138] sm:$0xff]
        %v501 = vld [vmem:[#allocation7 + $0x140] sm:$0xff]
        %v502 = vld [vmem:[#allocation7 + $0x148] sm:$0xff]
        %v503 = vld [vmem:[#allocation7 + $0x150] sm:$0xff]
        %v504 = vld [vmem:[#allocation7 + $0x158] sm:$0xff]
        %v505 = vld [vmem:[#allocation7 + $0x160] sm:$0xff]
        %v506 = vld [vmem:[#allocation7 + $0x168] sm:$0xff]
        %v507 = vld [vmem:[#allocation7 + $0x170] sm:$0xff]
        %v508 = vld [vmem:[#allocation7 + $0x178] sm:$0xff]
        %v509 = vlaneseq
        %v510 = vshrl.u32 %v509, 7
        %v511 = vsub.s32 1, %v510
        %v512 = vrot.slane %v248, %v511
        %513 = vmatprep.subr.mxu0 0.0
        %514 = vmatpush1.msra.mxu0 %v461
        %515 = vmatprep.subr.mxu0 0.0
        %516 = vmatpush1.msra.mxu0 %v462
        %517 = vmatprep.subr.mxu0 0.0
        %518 = vmatpush1.msra.mxu0 %v463
        %519 = vmatprep.subr.mxu0 0.0
        %520 = vmatpush1.msra.mxu0 %v464
        %521 = vmatprep.subr.mxu0 0.0
        %522 = vmatpush1.msra.mxu0 %v465
        %523 = vmatprep.subr.mxu0 0.0
        %524 = vmatpush1.msra.mxu0 %v466
        %525 = vmatprep.subr.mxu0 0.0
        %526 = vmatpush1.msra.mxu0 %v467
        %527 = vmatprep.subr.mxu0 0.0
        %528 = vmatpush1.msra.mxu0 %v468
        %529 = vmatprep.subr.mxu0 0.0
        %530 = vmatpush1.msra.mxu0 %v469
        %531 = vmatprep.subr.mxu0 0.0
        %532 = vmatpush1.msra.mxu0 %v470
        %533 = vmatprep.subr.mxu0 0.0
        %534 = vmatpush1.msra.mxu0 %v471
        %535 = vmatprep.subr.mxu0 0.0
        %536 = vmatpush1.msra.mxu0 %v472
        %537 = vmatprep.subr.mxu0 0.0
        %538 = vmatpush1.msra.mxu0 %v473
        %539 = vmatprep.subr.mxu0 0.0
        %540 = vmatpush1.msra.mxu0 %v474
        %541 = vmatprep.subr.mxu0 0.0
        %542 = vmatpush1.msra.mxu0 %v475
        %543 = vmatprep.subr.mxu0 0.0
        %544 = vmatpush1.msra.mxu0 %v476
        %545 = vmatprep.subr.mxu0 0.0
        %546 = vmatpush1.msra.mxu0 %v477
        %547 = vmatprep.subr.mxu0 0.0
        %548 = vmatpush1.msra.mxu0 %v478
        %549 = vmatprep.subr.mxu0 0.0
        %550 = vmatpush1.msra.mxu0 %v479
        %551 = vmatprep.subr.mxu0 0.0
        %552 = vmatpush1.msra.mxu0 %v480
        %553 = vmatprep.subr.mxu0 0.0
        %554 = vmatpush1.msra.mxu0 %v481
        %555 = vmatprep.subr.mxu0 0.0
        %556 = vmatpush1.msra.mxu0 %v482
        %557 = vmatprep.subr.mxu0 0.0
        %558 = vmatpush1.msra.mxu0 %v483
        %559 = vmatprep.subr.mxu0 0.0
        %560 = vmatpush1.msra.mxu0 %v484
        %561 = vmatprep.subr.mxu0 0.0
        %562 = vmatpush1.msra.mxu0 %v485
        %563 = vmatprep.subr.mxu0 0.0
        %564 = vmatpush1.msra.mxu0 %v486
        %565 = vmatprep.subr.mxu0 0.0
        %566 = vmatpush1.msra.mxu0 %v487
        %567 = vmatprep.subr.mxu0 0.0
        %568 = vmatpush1.msra.mxu0 %v488
        %569 = vmatprep.subr.mxu0 0.0
        %570 = vmatpush1.msra.mxu0 %v489
        %571 = vmatprep.subr.mxu0 0.0
        %572 = vmatpush1.msra.mxu0 %v490
        %573 = vmatprep.subr.mxu0 0.0
        %574 = vmatpush1.msra.mxu0 %v491
        %575 = vmatprep.subr.mxu0 0.0
        %576 = vmatpush1.msra.mxu0 %v492
        %577 = vmatprep.mubr.f32.mxu0 %v425
        %578 = vmatmul.mubr.f32.gmra.mrb[0].mxu0 %v447
        %v579 = vpop.f32.mrb[0].mxu0
        %v580 = vadd.f32 %v512, %v579
        %v581 = vpop.f32.mrb[0].mxu0
        %582 = vmatprep.mubr.f32.mxu0 %v426
        %583 = vmatmul.mubr.f32.gmra.mrb[0].mxu0 %v439
        %v584 = vpop.f32.mrb[0].mxu0
        %v585 = vadd.f32 %v512, %v584
        %v586 = vpop.f32.mrb[0].mxu0
        %587 = vmatprep.mubr.f32.mxu0 %v427
        %588 = vmatmul.mubr.f32.gmra.mrb[0].mxu0 %v448
        %v589 = vpop.f32.mrb[0].mxu0
        %v590 = vadd.f32 %v512, %v589
        %v591 = vpop.f32.mrb[0].mxu0
        %592 = vmatprep.mubr.f32.mxu0 %v428
        %593 = vmatmul.mubr.f32.gmra.mrb[0].mxu0 %v442
        %v594 = vpop.f32.mrb[0].mxu0
        %v595 = vadd.f32 %v512, %v594
        %v596 = vpop.f32.mrb[0].mxu0
        %597 = vdwg.mxu0
        %598 = vmatprep.subr.mxu0 0.0
        %599 = vmatpush1.msra.mxu0 %v493
        %600 = vmatprep.subr.mxu0 0.0
        %601 = vmatpush1.msra.mxu0 %v494
        %602 = vmatprep.subr.mxu0 0.0
        %603 = vmatpush1.msra.mxu0 %v495
        %604 = vmatprep.subr.mxu0 0.0
        %605 = vmatpush1.msra.mxu0 %v496
        %606 = vmatprep.subr.mxu0 0.0
        %607 = vmatpush1.msra.mxu0 %v497
        %608 = vmatprep.subr.mxu0 0.0
        %609 = vmatpush1.msra.mxu0 %v498
        %610 = vmatprep.subr.mxu0 0.0
        %611 = vmatpush1.msra.mxu0 %v499
        %612 = vmatprep.subr.mxu0 0.0
        %613 = vmatpush1.msra.mxu0 %v500
        %614 = vmatprep.subr.mxu0 0.0
        %615 = vmatpush1.msra.mxu0 %v501
        %616 = vmatprep.subr.mxu0 0.0
        %617 = vmatpush1.msra.mxu0 %v502
        %618 = vmatprep.subr.mxu0 0.0
        %619 = vmatpush1.msra.mxu0 %v503
        %620 = vmatprep.subr.mxu0 0.0
        %621 = vmatpush1.msra.mxu0 %v504
        %622 = vmatprep.subr.mxu0 0.0
        %623 = vmatpush1.msra.mxu0 %v505
        %624 = vmatprep.subr.mxu0 0.0
        %625 = vmatpush1.msra.mxu0 %v506
        %626 = vmatprep.subr.mxu0 0.0
        %627 = vmatpush1.msra.mxu0 %v507
        %628 = vmatprep.subr.mxu0 0.0
        %629 = vmatpush1.msra.mxu0 %v508
        %630 = vmatprep.subr.mxu0 0.0
        %631 = vmatpush1.msra.mxu0 0.0
        %632 = vmatprep.subr.mxu0 0.0
        %633 = vmatpush1.msra.mxu0 0.0
        %634 = vmatprep.subr.mxu0 0.0
        %635 = vmatpush1.msra.mxu0 0.0
        %636 = vmatprep.subr.mxu0 0.0
        %637 = vmatpush1.msra.mxu0 0.0
        %638 = vmatprep.subr.mxu0 0.0
        %639 = vmatpush1.msra.mxu0 0.0
        %640 = vmatprep.subr.mxu0 0.0
        %641 = vmatpush1.msra.mxu0 0.0
        %642 = vmatprep.subr.mxu0 0.0
        %643 = vmatpush1.msra.mxu0 0.0
        %644 = vmatprep.subr.mxu0 0.0
        %645 = vmatpush1.msra.mxu0 0.0
        %646 = vmatprep.subr.mxu0 0.0
        %647 = vmatpush1.msra.mxu0 0.0
        %648 = vmatprep.subr.mxu0 0.0
        %649 = vmatpush1.msra.mxu0 0.0
        %650 = vmatprep.subr.mxu0 0.0
        %651 = vmatpush1.msra.mxu0 0.0
        %652 = vmatprep.subr.mxu0 0.0
        %653 = vmatpush1.msra.mxu0 0.0
        %654 = vmatprep.subr.mxu0 0.0
        %655 = vmatpush1.msra.mxu0 0.0
        %656 = vmatprep.subr.mxu0 0.0
        %657 = vmatpush1.msra.mxu0 0.0
        %658 = vmatprep.subr.mxu0 0.0
        %659 = vmatpush1.msra.mxu0 0.0
        %660 = vmatprep.subr.mxu0 0.0
        %661 = vmatpush1.msra.mxu0 0.0
        %662 = vmatprep.mubr.f32.mxu0 0.0
        %663 = vmatmul.mubr.f32.gmra.mrb[0].mxu0 %v450
        %v664 = vpop.f32.mrb[0].mxu0
        %v665 = vadd.f32 %v580, %v664
        %v666 = vpop.f32.mrb[0].mxu0
        %667 = vmatprep.mubr.f32.mxu0 0.0
        %668 = vmatmul.mubr.f32.gmra.mrb[0].mxu0 %v459
        %v669 = vpop.f32.mrb[0].mxu0
        %v670 = vadd.f32 %v585, %v669
        %v671 = vpop.f32.mrb[0].mxu0
        %672 = vmatprep.mubr.f32.mxu0 0.0
        %673 = vmatmul.mubr.f32.gmra.mrb[0].mxu0 %v452
        %v674 = vpop.f32.mrb[0].mxu0
        %v675 = vadd.f32 %v590, %v674
        %v676 = vpop.f32.mrb[0].mxu0
        %677 = vmatprep.mubr.f32.mxu0 0.0
        %678 = vmatmul.mubr.f32.gmra.mrb[0].mxu0 %v460
        %v679 = vpop.f32.mrb[0].mxu0
        %v680 = vadd.f32 %v595, %v679
        %v681 = vpop.f32.mrb[0].mxu0
        %682 = vdwg.mxu0
        %v683 = vmax.f32 %v665, 0.0
        %v684 = vmax.f32 %v670, 0.0
        %v685 = vmax.f32 %v675, 0.0
        %v686 = vmax.f32 %v680, 0.0
        %687 = vst [vmem:[%s245] sm:$0xff] %v683
        %688 = vst [vmem:[%s245 + $0x8] sm:$0xff] %v684
        %689 = vst [vmem:[%s245 + $0x10] sm:$0xff] %v685
        %690 = vst [vmem:[%s245 + $0x18] sm:$0xff] %v686
        %s691 = sand.u32 %s119, 1
        %s692 = scalar_lea.sflag [#allocation4], %s691
        %s693 = sand.u32 %s119, 1
        %s694 = smul.addr %s693, 32
        %s695 = scalar_lea.vmem [#allocation8], %s694
        // Predicated region
        $region49: #{tpu_custom_call.1} parent=35 // pred_check
          %p696 = pneg %p129
        $region50: #{tpu_custom_call.1} parent=35 // pred_check_branch
          %698 = sbr.rel (%p696) target = $region52
        $region51: #{tpu_custom_call.1} parent=35 // pred_region
          %s699 = smul.u32 2, %s22
          %s701 = ssub.s32 512, 512
          %702 = vsyncadd %s692, %s701
          %s703 = smul.addr %s699, 2
          %s704 = smul.addr %s703, 128
          %s705 = scalar_lea.hbm %s4, %s704
          %s706 = sshll.u32 %s695, 4
          %s707 = int_to_ptr.vmem [resolvable:$true] %s706
          %712 = dma.vmem_to_hbm [thread:$0]  %s707, 512, %s705, %s692, 128, 128, 8
        $region52: #{tpu_custom_call.1} parent=35 // pred_fallthru
          _
      $region36: #{tpu_custom_call.1} parent=5 // pred_fallthru
        _
      %p713 = scmp.le.s32.totalorder 2, %s17
      // Predicated region
      $region53: #{tpu_custom_call.1} parent=5 // pred_check
        %p714 = pneg %p713
      $region54: #{tpu_custom_call.1} parent=5 // pred_check_branch
        %716 = sbr.rel (%p714) target = $region56
      $region55: #{tpu_custom_call.1} parent=5 // pred_region
        %s717 = ssub.s32 %s17, 2
        // Predicated region
        $region57: #{tpu_custom_call.1} parent=55 // pred_check
          %p718 = pneg %p135
        $region58: #{tpu_custom_call.1} parent=55 // pred_check_branch
          %720 = sbr.rel (%p718) target = $region60
        $region59: #{tpu_custom_call.1} parent=55 // pred_region
          %s721 = sand.u32 %s120, 1
          %s722 = scalar_lea.sflag [#allocation4], %s721
          %s723 = sand.u32 %s120, 1
          %s724 = smul.addr %s723, 32
          %s725 = scalar_lea.vmem [#allocation8], %s724
          %726 = dma.done %s722, 512
        $region60: #{tpu_custom_call.1} parent=55 // pred_fallthru
          _
      $region56: #{tpu_custom_call.1} parent=5 // pred_fallthru
        _
    $region6: #{tpu_custom_call.1} parent=1 // loop_footer
      %s21 = sadd.s32 1, %s17
    $region7: #{tpu_custom_call.1} parent=1 // loop_footer_branch
      %16 = sbr.rel target = $region3
    $region8: #{tpu_custom_call.1} parent=1 // loop_exit
      _
    %727 = vsyncpa [#allocation3], 1
    %s728 = scalar_lea.sflag [#allocation3], 1
    %729 = vsyncpa %s728, 1
    %730 = vsyncpa [#allocation6], 1
    %731 = vsyncpa [#allocation4], 1
    %s732 = scalar_lea.sflag [#allocation4], 1
    %733 = vsyncpa %s732, 1

</llo_original>
